<compile_context>
chip_gen: v5e
topology: v5e:2x2
jax: 0.10.0
libtpu: 0.0.40
codegen_flags: <defaults>
</compile_context>

<pallas_src>
import functools

import jax
import jax.numpy as jnp
from jax.experimental import pallas as pl
from jax.experimental.pallas import tpu as pltpu


def _grad_kernel(x_ref, o_ref, *, penalty, sx, sy):
    # x_ref: (TB, H, W) block of slabs; differences are per-slab (axes 1, 2).
    x = x_ref[...].astype(jnp.float32)
    dy = jnp.abs(x[:, 1:, :] - x[:, :-1, :])     # gradient along H
    dx = jnp.abs(x[:, :, 1:] - x[:, :, :-1])     # gradient along W
    if penalty == 'l2':
        dy = dy * dy
        dx = dx * dx
    # Pre-scaled partial contribution of this block (mean-normalization,
    # the 0.5 factor, and loss_mult are folded into sx / sy).
    p = jnp.sum(dx) * sx + jnp.sum(dy) * sy
    # Lane/sublane-aligned (1, 8, 128) output block for this grid step.
    o_ref[...] = jnp.broadcast_to(p, o_ref.shape).astype(jnp.float32)


def grad_loss(dvf, penalty='l1', loss_mult=None, block_bytes=4 * 1024 * 1024):
    """N-D gradient loss (2-D spatial version, matching the PyTorch module)."""
    B, C, H, W = dvf.shape
    BC = B * C
    x = dvf.reshape(BC, H, W)

    # Slabs per grid step: as many as fit the per-block byte budget
    # (double-buffered input + f32 temporaries stay well under the scoped
    # VMEM limit on v5e / v6e / v7x).
    slab_bytes = H * W * 4
    TB = max(1, min(BC, block_bytes // max(slab_bytes, 1)))
    num_blocks = -(-BC // TB)            # cdiv
    pad = num_blocks * TB - BC
    if pad:
        x = jnp.concatenate(
            [x, jnp.zeros((pad, H, W), dtype=x.dtype)], axis=0)

    # Exact element counts used by torch.mean (on the *unpadded* field).
    n_dx = BC * H * (W - 1)
    n_dy = BC * (H - 1) * W
    lm = 1.0 if loss_mult is None else float(loss_mult)
    # Guard H==1 / W==1 (torch.mean of an empty tensor would be NaN anyway).
    sx = (0.5 * lm / n_dx) if n_dx > 0 else 0.0
    sy = (0.5 * lm / n_dy) if n_dy > 0 else 0.0

    kernel = functools.partial(_grad_kernel, penalty=penalty, sx=sx, sy=sy)

    partials = pl.pallas_call(
        kernel,
        out_shape=jax.ShapeDtypeStruct((num_blocks, 8, 128), jnp.float32),
        grid_spec=pltpu.PrefetchScalarGridSpec(
            num_scalar_prefetch=0,
            grid=(num_blocks,),
            in_specs=[pl.BlockSpec((TB, H, W), lambda i: (i, 0, 0))],
            out_specs=pl.BlockSpec((1, 8, 128), lambda i: (i, 0, 0)),
        ),
        compiler_params=pltpu.CompilerParams(
            dimension_semantics=("parallel",),
            vmem_limit_bytes=32 * 1024 * 1024),
    )(x)

    # Tiny final reduction over per-block partial sums (each block wrote its
    # scalar broadcast across its (8, 128) output tile).
    return jnp.sum(partials[:, 0, 0])


def _grad_loss_ref(dvf, penalty='l1', loss_mult=None):
    dy = jnp.abs(dvf[:, :, 1:, :] - dvf[:, :, :-1, :])
    dx = jnp.abs(dvf[:, :, :, 1:] - dvf[:, :, :, :-1])
    if penalty == 'l2':
        dy = dy * dy
        dx = dx * dx
    d = (jnp.mean(dx) + jnp.mean(dy)) / 2
    if loss_mult is not None:
        d = d * loss_mult
    return d


if __name__ == "__main__":
    key = jax.random.PRNGKey(0)
    # dvf: displacement vector field, NCHW (batch=2, channels=4 flow comps,
    # spatial 16x16).
    dvf = jax.random.normal(key, (2, 4, 16, 16), dtype=jnp.float32)

    for penalty, loss_mult in (('l1', None), ('l2', 2.0)):
        ref = _grad_loss_ref(dvf, penalty=penalty, loss_mult=loss_mult)

        # Default block budget: whole B*C fits in one grid step here.
        out = grad_loss(dvf, penalty=penalty, loss_mult=loss_mult)
        out = jax.block_until_ready(out)
        assert jnp.allclose(out, ref, rtol=1e-5, atol=1e-6), (out, ref)

        # Small block budget: exercises multi-block parallel grid + padding
        # (TB=3 -> 3 blocks with one zero-padded slab).
        out_mb = grad_loss(dvf, penalty=penalty, loss_mult=loss_mult,
                           block_bytes=3 * 1024)
        out_mb = jax.block_until_ready(out_mb)
        assert jnp.allclose(out_mb, ref, rtol=1e-5, atol=1e-6), (out_mb, ref)

    print("KERNEL_OK")
</pallas_src>

<mosaic_0001>
module attributes {stable_mosaic.version = 11 : i64} {
  func.func @_grad_kernel(%arg0: i32, %arg1: memref<8x16x16xf32, #tpu.memory_space<vmem>>, %arg2: memref<1x8x128xf32, #tpu.memory_space<vmem>>) attributes {dimension_semantics = [#tpu.dimension_semantics<parallel>], iteration_bounds = array<i64: 1>, scalar_prefetch = 0 : i64, scratch_operands = 0 : i64, tpu.core_type = #tpu.core_type<tc>, window_params = [{transform_indices = @transform_0, window_bounds = array<i64: 8, 16, 16>}, {transform_indices = @transform_1, window_bounds = array<i64: 1, 8, 128>}]} {
    %c0 = arith.constant 0 : index
    %c0_0 = arith.constant 0 : index
    %c0_1 = arith.constant 0 : index
    %0 = vector.load %arg1[%c0, %c0_0, %c0_1] : memref<8x16x16xf32, #tpu.memory_space<vmem>>, vector<8x16x16xf32>
    %1 = vector.extract_strided_slice %0 {offsets = [0, 1, 0], sizes = [8, 15, 16], strides = [1, 1, 1]} : vector<8x16x16xf32> to vector<8x15x16xf32>
    %2 = vector.extract_strided_slice %0 {offsets = [0, 0, 0], sizes = [8, 15, 16], strides = [1, 1, 1]} : vector<8x16x16xf32> to vector<8x15x16xf32>
    %3 = arith.subf %1, %2 : vector<8x15x16xf32>
    %4 = math.absf %3 : vector<8x15x16xf32>
    %5 = vector.extract_strided_slice %0 {offsets = [0, 0, 1], sizes = [8, 16, 15], strides = [1, 1, 1]} : vector<8x16x16xf32> to vector<8x16x15xf32>
    %6 = vector.extract_strided_slice %0 {offsets = [0, 0, 0], sizes = [8, 16, 15], strides = [1, 1, 1]} : vector<8x16x16xf32> to vector<8x16x15xf32>
    %7 = arith.subf %5, %6 : vector<8x16x15xf32>
    %8 = math.absf %7 : vector<8x16x15xf32>
    %9 = vector.shape_cast %8 : vector<8x16x15xf32> to vector<1x8x16x15xf32>
    %cst = arith.constant dense<0.000000e+00> : vector<1xf32>
    %10 = vector.multi_reduction <add>, %9, %cst [1, 2, 3] : vector<1x8x16x15xf32> to vector<1xf32>
    %11 = vector.shape_cast %10 : vector<1xf32> to vector<1x1x1x1xf32>
    %12 = vector.extract %11[0, 0, 0, 0] : f32 from vector<1x1x1x1xf32>
    %cst_2 = arith.constant 2.6041668E-4 : f32
    %13 = arith.mulf %12, %cst_2 : f32
    %14 = vector.shape_cast %4 : vector<8x15x16xf32> to vector<1x8x15x16xf32>
    %cst_3 = arith.constant dense<0.000000e+00> : vector<1xf32>
    %15 = vector.multi_reduction <add>, %14, %cst_3 [1, 2, 3] : vector<1x8x15x16xf32> to vector<1xf32>
    %16 = vector.shape_cast %15 : vector<1xf32> to vector<1x1x1x1xf32>
    %17 = vector.extract %16[0, 0, 0, 0] : f32 from vector<1x1x1x1xf32>
    %cst_4 = arith.constant 2.6041668E-4 : f32
    %18 = arith.mulf %17, %cst_4 : f32
    %19 = arith.addf %13, %18 : f32
    %20 = vector.broadcast %19 : f32 to vector<1x8x128xf32>
    %c0_5 = arith.constant 0 : index
    %c0_6 = arith.constant 0 : index
    %c0_7 = arith.constant 0 : index
    %21 = vector.load %arg2[%c0_5, %c0_6, %c0_7] : memref<1x8x128xf32, #tpu.memory_space<vmem>>, vector<1x8x128xf32>
    tpu.vector_store %arg2[%c0_5, %c0_6, %c0_7], %20 {strides = array<i32>} : memref<1x8x128xf32, #tpu.memory_space<vmem>>, vector<1x8x128xf32>,
    return
  }
  func.func @transform_0(%arg0: i32) -> (i32, i32, i32) {
    %c0_i32 = arith.constant 0 : i32
    %c0_i32_0 = arith.constant 0 : i32
    %c0_i32_1 = arith.constant 0 : i32
    return %arg0, %c0_i32, %c0_i32_0 : i32, i32, i32
  }
  func.func @transform_1(%arg0: i32) -> (i32, i32, i32) {
    %c0_i32 = arith.constant 0 : i32
    %c0_i32_0 = arith.constant 0 : i32
    %c0_i32_1 = arith.constant 0 : i32
    return %arg0, %c0_i32, %c0_i32_0 : i32, i32, i32
  }
}

</mosaic_0001>

<llo_original>
// kernel: tpu_custom_call.1
$region0: #{tpu_custom_call.1}
  #allocation0 [shape = 'u32[]', space=smem, size = 0x4, offset = 0x4, fixed_abs, tag = 'smem constant byte address 0x4 - core index']
  #allocation1 [shape = 'u32[72,128]{1,0:T(1,128)}', space=vmem, size = 0x9000, scoped, tag = 'internal scratch']
  %s0 = inlined_call_operand.hbm [shape: f32[8,16,16], index: 0, kind: input, shape index: {}]
  %s1 = inlined_call_operand.hbm [shape: f32[1,8,128], index: 1, kind: output, shape index: {}]
  %s2 = sld [smem:[#allocation0]]
  $region18: #{tpu_custom_call.1} parent=0
    _
  %s4 = ssub.s32 1, %s2
  %s5 = scalar_select 0, %s4, %s2
  $region1: #{tpu_custom_call.1} parent=0
    #allocation2 [shape = 'u8[65536]{0}', space=vmem, size = 0x10000, scoped, tag = 'input window, operand 0, single buffered']
    #allocation3 [shape = 's32[1]{0}', space=sflag, size = 0x4, scoped, tag = 'scoped memory for tpu_custom_call.1']
    #allocation4 [shape = 's32[1]{0}', space=sflag, size = 0x4, scoped, tag = 'scoped memory for tpu_custom_call.1']
    #allocation5 [shape = 'u8[4096]{0}', space=vmem, size = 0x1000, scoped, tag = 'output window, operand 0, single buffered']
    %6 = vsyncpa [#allocation3], 0
    %7 = vsyncpa [#allocation4], 0
    // Predicated region
    $region2: #{tpu_custom_call.1} parent=1 // pred_check
      _
    $region3: #{tpu_custom_call.1} parent=1 // pred_check_branch
      %9 = sbr.rel (0) target = $region5
    $region4: #{tpu_custom_call.1} parent=1 // pred_region
      %11 = vsyncadd [#allocation3], 0
      %s12 = sshll.u32 %s0, 4
      %s13 = int_to_ptr.hbm [resolvable:$true] %s12
      %s14 = sshll.u32 [#allocation2], 4
      %s15 = int_to_ptr.vmem [resolvable:$true] %s14
      %20 = dma.hbm_to_vmem [thread:$0]  %s13, 2048, %s15, [#allocation3], 128, 128, 8
    $region5: #{tpu_custom_call.1} parent=1 // pred_fallthru
      _
    // Predicated region
    $region6: #{tpu_custom_call.1} parent=1 // pred_check
      _
    $region7: #{tpu_custom_call.1} parent=1 // pred_check_branch
      %22 = sbr.rel (0) target = $region9
    $region8: #{tpu_custom_call.1} parent=1 // pred_region
      %24 = dma.done [#allocation3], 2048
    $region9: #{tpu_custom_call.1} parent=1 // pred_fallthru
      _
    %v25 = vld [vmem:[#allocation2] sm:$0xff]
    %v26 = vld [vmem:[#allocation2 + $0x8] sm:$0xff]
    %v27 = vld [vmem:[#allocation2 + $0x10] sm:$0xff]
    %v28 = vld [vmem:[#allocation2 + $0x18] sm:$0xff]
    %v29 = vld [vmem:[#allocation2 + $0x20] sm:$0xff]
    %v30 = vld [vmem:[#allocation2 + $0x28] sm:$0xff]
    %v31 = vld [vmem:[#allocation2 + $0x30] sm:$0xff]
    %v32 = vld [vmem:[#allocation2 + $0x38] sm:$0xff]
    %v33 = vld [vmem:[#allocation2 + $0x40] sm:$0xff]
    %v34 = vld [vmem:[#allocation2 + $0x48] sm:$0xff]
    %v35 = vld [vmem:[#allocation2 + $0x50] sm:$0xff]
    %v36 = vld [vmem:[#allocation2 + $0x58] sm:$0xff]
    %v37 = vld [vmem:[#allocation2 + $0x60] sm:$0xff]
    %v38 = vld [vmem:[#allocation2 + $0x68] sm:$0xff]
    %v39 = vld [vmem:[#allocation2 + $0x70] sm:$0xff]
    %v40 = vld [vmem:[#allocation2 + $0x78] sm:$0xff]
    %vm57 = vcmask 1040384
    %v58 = vrot.slane %v25, 7
    %v59 = vrot.slane %v26, 7
    %v60 = vsel %vm57, %v58, %v59
    %v61 = vrot.slane %v27, 7
    %v62 = vrot.slane %v28, 7
    %v63 = vsel %vm57, %v61, %v62
    %v64 = vrot.slane %v29, 7
    %v65 = vrot.slane %v30, 7
    %v66 = vsel %vm57, %v64, %v65
    %v67 = vrot.slane %v31, 7
    %v68 = vrot.slane %v32, 7
    %v69 = vsel %vm57, %v67, %v68
    %v70 = vrot.slane %v33, 7
    %v71 = vrot.slane %v34, 7
    %v72 = vsel %vm57, %v70, %v71
    %v73 = vrot.slane %v35, 7
    %v74 = vrot.slane %v36, 7
    %v75 = vsel %vm57, %v73, %v74
    %v76 = vrot.slane %v37, 7
    %v77 = vrot.slane %v38, 7
    %v78 = vsel %vm57, %v76, %v77
    %v79 = vrot.slane %v39, 7
    %v80 = vrot.slane %v40, 7
    %v81 = vsel %vm57, %v79, %v80
    %v98 = vsub.f32 %v25, %v58
    %v99 = vsub.f32 %v26, %v60
    %v100 = vsub.f32 %v27, %v61
    %v101 = vsub.f32 %v28, %v63
    %v102 = vsub.f32 %v29, %v64
    %v103 = vsub.f32 %v30, %v66
    %v104 = vsub.f32 %v31, %v67
    %v105 = vsub.f32 %v32, %v69
    %v106 = vsub.f32 %v33, %v70
    %v107 = vsub.f32 %v34, %v72
    %v108 = vsub.f32 %v35, %v73
    %v109 = vsub.f32 %v36, %v75
    %v110 = vsub.f32 %v37, %v76
    %v111 = vsub.f32 %v38, %v78
    %v112 = vsub.f32 %v39, %v79
    %v113 = vsub.f32 %v40, %v81
    %v114 = vand.u32 2147483647, %v98
    %v115 = vand.u32 2147483647, %v99
    %v116 = vand.u32 2147483647, %v100
    %v117 = vand.u32 2147483647, %v101
    %v118 = vand.u32 2147483647, %v102
    %v119 = vand.u32 2147483647, %v103
    %v120 = vand.u32 2147483647, %v104
    %v121 = vand.u32 2147483647, %v105
    %v122 = vand.u32 2147483647, %v106
    %v123 = vand.u32 2147483647, %v107
    %v124 = vand.u32 2147483647, %v108
    %v125 = vand.u32 2147483647, %v109
    %v126 = vand.u32 2147483647, %v110
    %v127 = vand.u32 2147483647, %v111
    %v128 = vand.u32 2147483647, %v112
    %v129 = vand.u32 2147483647, %v113
    %130 = vrot.lane.b32.xlu0 %v25, 1
    %v131 = vpop.permute.xlu0 %130
    %132 = vrot.lane.b32.xlu0 %v26, 1
    %v133 = vpop.permute.xlu0 %132
    %134 = vrot.lane.b32.xlu0 %v27, 1
    %v135 = vpop.permute.xlu0 %134
    %136 = vrot.lane.b32.xlu0 %v28, 1
    %v137 = vpop.permute.xlu0 %136
    %138 = vrot.lane.b32.xlu0 %v29, 1
    %v139 = vpop.permute.xlu0 %138
    %140 = vrot.lane.b32.xlu0 %v30, 1
    %v141 = vpop.permute.xlu0 %140
    %142 = vrot.lane.b32.xlu0 %v31, 1
    %v143 = vpop.permute.xlu0 %142
    %144 = vrot.lane.b32.xlu0 %v32, 1
    %v145 = vpop.permute.xlu0 %144
    %146 = vrot.lane.b32.xlu0 %v33, 1
    %v147 = vpop.permute.xlu0 %146
    %148 = vrot.lane.b32.xlu0 %v34, 1
    %v149 = vpop.permute.xlu0 %148
    %150 = vrot.lane.b32.xlu0 %v35, 1
    %v151 = vpop.permute.xlu0 %150
    %152 = vrot.lane.b32.xlu0 %v36, 1
    %v153 = vpop.permute.xlu0 %152
    %154 = vrot.lane.b32.xlu0 %v37, 1
    %v155 = vpop.permute.xlu0 %154
    %156 = vrot.lane.b32.xlu0 %v38, 1
    %v157 = vpop.permute.xlu0 %156
    %158 = vrot.lane.b32.xlu0 %v39, 1
    %v159 = vpop.permute.xlu0 %158
    %160 = vrot.lane.b32.xlu0 %v40, 1
    %v161 = vpop.permute.xlu0 %160
    %v178 = vsub.f32 %v25, %v131
    %v179 = vsub.f32 %v26, %v133
    %v180 = vsub.f32 %v27, %v135
    %v181 = vsub.f32 %v28, %v137
    %v182 = vsub.f32 %v29, %v139
    %v183 = vsub.f32 %v30, %v141
    %v184 = vsub.f32 %v31, %v143
    %v185 = vsub.f32 %v32, %v145
    %v186 = vsub.f32 %v33, %v147
    %v187 = vsub.f32 %v34, %v149
    %v188 = vsub.f32 %v35, %v151
    %v189 = vsub.f32 %v36, %v153
    %v190 = vsub.f32 %v37, %v155
    %v191 = vsub.f32 %v38, %v157
    %v192 = vsub.f32 %v39, %v159
    %v193 = vsub.f32 %v40, %v161
    %v194 = vand.u32 2147483647, %v178
    %v195 = vand.u32 2147483647, %v179
    %v196 = vand.u32 2147483647, %v180
    %v197 = vand.u32 2147483647, %v181
    %v198 = vand.u32 2147483647, %v182
    %v199 = vand.u32 2147483647, %v183
    %v200 = vand.u32 2147483647, %v184
    %v201 = vand.u32 2147483647, %v185
    %v202 = vand.u32 2147483647, %v186
    %v203 = vand.u32 2147483647, %v187
    %v204 = vand.u32 2147483647, %v188
    %v205 = vand.u32 2147483647, %v189
    %v206 = vand.u32 2147483647, %v190
    %v207 = vand.u32 2147483647, %v191
    %v208 = vand.u32 2147483647, %v192
    %v209 = vand.u32 2147483647, %v193
    %226 = vrot.lane.b32.xlu0 %v194, 127
    %v227 = vpop.permute.xlu0 %226
    %228 = vrot.lane.b32.xlu0 %v195, 127
    %v229 = vpop.permute.xlu0 %228
    %230 = vrot.lane.b32.xlu0 %v196, 127
    %v231 = vpop.permute.xlu0 %230
    %232 = vrot.lane.b32.xlu0 %v197, 127
    %v233 = vpop.permute.xlu0 %232
    %234 = vrot.lane.b32.xlu0 %v198, 127
    %v235 = vpop.permute.xlu0 %234
    %236 = vrot.lane.b32.xlu0 %v199, 127
    %v237 = vpop.permute.xlu0 %236
    %238 = vrot.lane.b32.xlu0 %v200, 127
    %v239 = vpop.permute.xlu0 %238
    %240 = vrot.lane.b32.xlu0 %v201, 127
    %v241 = vpop.permute.xlu0 %240
    %242 = vrot.lane.b32.xlu0 %v202, 127
    %v243 = vpop.permute.xlu0 %242
    %244 = vrot.lane.b32.xlu0 %v203, 127
    %v245 = vpop.permute.xlu0 %244
    %246 = vrot.lane.b32.xlu0 %v204, 127
    %v247 = vpop.permute.xlu0 %246
    %248 = vrot.lane.b32.xlu0 %v205, 127
    %v249 = vpop.permute.xlu0 %248
    %250 = vrot.lane.b32.xlu0 %v206, 127
    %v251 = vpop.permute.xlu0 %250
    %252 = vrot.lane.b32.xlu0 %v207, 127
    %v253 = vpop.permute.xlu0 %252
    %254 = vrot.lane.b32.xlu0 %v208, 127
    %v255 = vpop.permute.xlu0 %254
    %256 = vrot.lane.b32.xlu0 %v209, 127
    %v257 = vpop.permute.xlu0 %256
    %vm274 = vcmask 121856
    %v275 = vsel %vm274, %v227, 0.0
    %v276 = vsel %vm274, %v229, 0.0
    %v277 = vadd.f32 %v275, %v276
    %v278 = vsel %vm274, %v231, 0.0
    %v279 = vadd.f32 %v277, %v278
    %v280 = vsel %vm274, %v233, 0.0
    %v281 = vadd.f32 %v279, %v280
    %v282 = vsel %vm274, %v235, 0.0
    %v283 = vadd.f32 %v281, %v282
    %v284 = vsel %vm274, %v237, 0.0
    %v285 = vadd.f32 %v283, %v284
    %v286 = vsel %vm274, %v239, 0.0
    %v287 = vadd.f32 %v285, %v286
    %v288 = vsel %vm274, %v241, 0.0
    %v289 = vadd.f32 %v287, %v288
    %v290 = vsel %vm274, %v243, 0.0
    %v291 = vadd.f32 %v289, %v290
    %v292 = vsel %vm274, %v245, 0.0
    %v293 = vadd.f32 %v291, %v292
    %v294 = vsel %vm274, %v247, 0.0
    %v295 = vadd.f32 %v293, %v294
    %v296 = vsel %vm274, %v249, 0.0
    %v297 = vadd.f32 %v295, %v296
    %v298 = vsel %vm274, %v251, 0.0
    %v299 = vadd.f32 %v297, %v298
    %v300 = vsel %vm274, %v253, 0.0
    %v301 = vadd.f32 %v299, %v300
    %v302 = vsel %vm274, %v255, 0.0
    %v303 = vadd.f32 %v301, %v302
    %v304 = vsel %vm274, %v257, 0.0
    %v305 = vadd.f32 %v303, %v304
    %306 = vadd.xlane.f32.xlu0 %v305
    %v307 = vpop.xlane.xlu0 %306
    %v308 = vrot.slane %v307, 4
    %v309 = vadd.f32 %v307, %v308
    %v310 = vrot.slane %v309, 2
    %v311 = vadd.f32 %v309, %v310
    %v312 = vrot.slane %v311, 1
    %v313 = vadd.f32 %v311, %v312
    %s314 = vtos %v313
    %s315 = smul.f32 %s314, 0.00026041668
    %vm332 = vcmask 1046528
    %v333 = vrot.slane %v114, 1
    %v334 = vrot.slane %v115, 1
    %v335 = vsel %vm332, %v333, %v334
    %v336 = vrot.slane %v116, 1
    %v337 = vrot.slane %v117, 1
    %v338 = vsel %vm332, %v336, %v337
    %v339 = vrot.slane %v118, 1
    %v340 = vrot.slane %v119, 1
    %v341 = vsel %vm332, %v339, %v340
    %v342 = vrot.slane %v120, 1
    %v343 = vrot.slane %v121, 1
    %v344 = vsel %vm332, %v342, %v343
    %v345 = vrot.slane %v122, 1
    %v346 = vrot.slane %v123, 1
    %v347 = vsel %vm332, %v345, %v346
    %v348 = vrot.slane %v124, 1
    %v349 = vrot.slane %v125, 1
    %v350 = vsel %vm332, %v348, %v349
    %v351 = vrot.slane %v126, 1
    %v352 = vrot.slane %v127, 1
    %v353 = vsel %vm332, %v351, %v352
    %v354 = vrot.slane %v128, 1
    %v355 = vrot.slane %v129, 1
    %v356 = vsel %vm332, %v354, %v355
    %vm373 = vcmask 130048
    %v374 = vsel %vm373, %v335, 0.0
    %vm375 = vcmask 129024
    %v376 = vsel %vm375, %v334, 0.0
    %v377 = vadd.f32 %v374, %v376
    %v378 = vsel %vm373, %v338, 0.0
    %v379 = vadd.f32 %v377, %v378
    %v380 = vsel %vm375, %v337, 0.0
    %v381 = vadd.f32 %v379, %v380
    %v382 = vsel %vm373, %v341, 0.0
    %v383 = vadd.f32 %v381, %v382
    %v384 = vsel %vm375, %v340, 0.0
    %v385 = vadd.f32 %v383, %v384
    %v386 = vsel %vm373, %v344, 0.0
    %v387 = vadd.f32 %v385, %v386
    %v388 = vsel %vm375, %v343, 0.0
    %v389 = vadd.f32 %v387, %v388
    %v390 = vsel %vm373, %v347, 0.0
    %v391 = vadd.f32 %v389, %v390
    %v392 = vsel %vm375, %v346, 0.0
    %v393 = vadd.f32 %v391, %v392
    %v394 = vsel %vm373, %v350, 0.0
    %v395 = vadd.f32 %v393, %v394
    %v396 = vsel %vm375, %v349, 0.0
    %v397 = vadd.f32 %v395, %v396
    %v398 = vsel %vm373, %v353, 0.0
    %v399 = vadd.f32 %v397, %v398
    %v400 = vsel %vm375, %v352, 0.0
    %v401 = vadd.f32 %v399, %v400
    %v402 = vsel %vm373, %v356, 0.0
    %v403 = vadd.f32 %v401, %v402
    %v404 = vsel %vm375, %v355, 0.0
    %v405 = vadd.f32 %v403, %v404
    %406 = vadd.xlane.f32.xlu0 %v405
    %v407 = vpop.xlane.xlu0 %406
    %v408 = vrot.slane %v407, 4
    %v409 = vadd.f32 %v407, %v408
    %v410 = vrot.slane %v409, 2
    %v411 = vadd.f32 %v409, %v410
    %v412 = vrot.slane %v411, 1
    %v413 = vadd.f32 %v411, %v412
    %s414 = vtos %v413
    %s415 = smul.f32 %s414, 0.00026041668
    %s416 = sadd.f32 %s315, %s415
    %v417 = vstv %s416
    %418 = vst [vmem:[#allocation5] sm:$0xff] %v417
    // Predicated region
    $region10: #{tpu_custom_call.1} parent=1 // pred_check
      _
    $region11: #{tpu_custom_call.1} parent=1 // pred_check_branch
      %420 = sbr.rel (0) target = $region13
    $region12: #{tpu_custom_call.1} parent=1 // pred_region
      %422 = vsyncadd [#allocation4], 0
      %s424 = sshll.u32 [#allocation5], 4
      %s425 = int_to_ptr.vmem [resolvable:$true] %s424
      %s426 = sshll.u32 %s1, 4
      %s427 = int_to_ptr.hbm [resolvable:$true] %s426
      %429 = dma.vmem_to_hbm [thread:$0]  %s425, 128, %s427, [#allocation4]
    $region13: #{tpu_custom_call.1} parent=1 // pred_fallthru
      _
    // Predicated region
    $region14: #{tpu_custom_call.1} parent=1 // pred_check
      _
    $region15: #{tpu_custom_call.1} parent=1 // pred_check_branch
      %431 = sbr.rel (0) target = $region17
    $region16: #{tpu_custom_call.1} parent=1 // pred_region
      %433 = dma.done [#allocation4], 128
    $region17: #{tpu_custom_call.1} parent=1 // pred_fallthru
      _
    %434 = vsyncpa [#allocation3], 1
    %435 = vsyncpa [#allocation4], 1

</llo_original>
